<compile_context>
chip_gen: v5e
topology: v5e:2x2
jax: 0.10.0
libtpu: 0.0.40
codegen_flags: <defaults>
</compile_context>

<pallas_src>
import functools
import math

import jax
import jax.numpy as jnp
from jax.experimental import pallas as pl
from jax.experimental.pallas import tpu as pltpu


def _mha_kernel(x_ref, wq_ref, bq_ref, wk_ref, bk_ref, wv_ref, bv_ref,
                wp_ref, bp_ref, o_ref, ctx_ref, *, num_heads, head_dim,
                inv_scale, approx_recip):
    """One grid step == one tile of Bt batch elements; all heads fused."""
    bt, n, e = x_ref.shape
    cdt = wq_ref.dtype                                 # compute dtype for MXU inputs

    x2 = x_ref[...].reshape(bt * n, e)                 # (Bt*N, E): leading-dim merge

    # Full-width, lane-dense Q/K/V projections: (Bt*N,E)@(E,E) with f32 accumulation.
    # Bias add and the constant 1/sqrt(E) scaling (folded into q) stay in f32.
    q = (jnp.dot(x2, wq_ref[...], preferred_element_type=jnp.float32)
         + bq_ref[...]) * inv_scale
    k = jnp.dot(x2, wk_ref[...], preferred_element_type=jnp.float32) + bk_ref[...]
    v = jnp.dot(x2, wv_ref[...], preferred_element_type=jnp.float32) + bv_ref[...]

    q3 = q.astype(cdt).reshape(bt, n, e)
    k3 = k.astype(cdt).reshape(bt, n, e)
    v3 = v.astype(cdt).reshape(bt, n, e)

    # Per-head attention.  Static unroll keeps the lane offsets h*D static; each
    # head's context is written into the concatenated-context scratch so a single
    # full-width output projection follows (matches the module's concat+project).
    for h in range(num_heads):
        lo = h * head_dim
        qh = q3[:, :, lo:lo + head_dim]                # (Bt, N, D)
        kh = k3[:, :, lo:lo + head_dim]
        vh = v3[:, :, lo:lo + head_dim]

        # energy ('bhqd,bhkd->bhqk' for this head): (Bt, N, N), f32.
        energy = jnp.einsum("bqd,bkd->bqk", qh, kh,
                            preferred_element_type=jnp.float32)

        # Numerically stable softmax in f32; reciprocal on the EUP slot.
        m = jnp.max(energy, axis=-1, keepdims=True)
        p = jnp.exp(energy - m)
        att = p * pl.reciprocal(jnp.sum(p, axis=-1, keepdims=True),
                                approx=approx_recip)
        # TODO(synk): att_drop (nn.Dropout) is identity in eval mode; not applied.
        # TODO(synk): mask=None path only (module default forward).

        # ctx ('bhal,bhlv->bhav' for this head): (Bt, N, D), f32 accumulation.
        ctx = jnp.einsum("bqk,bkd->bqd", att.astype(cdt), vh,
                         preferred_element_type=jnp.float32)
        ctx_ref[:, :, lo:lo + head_dim] = ctx.astype(cdt)

    # One full-width output projection over the assembled context.
    ctx2 = ctx_ref[...].reshape(bt * n, e)
    out = jnp.dot(ctx2, wp_ref[...], preferred_element_type=jnp.float32) + bp_ref[...]
    o_ref[...] = out.reshape(bt, n, e).astype(o_ref.dtype)   # single dense store


def _default_batch_tile(B):
    """Largest batch tile that still gives ~4 grid steps (>=2 when B >= 2)."""
    target_steps = min(B, 4)
    for bt in range(max(B // target_steps, 1), 0, -1):
        if B % bt == 0:
            return bt
    return 1


def _default_vmem_limit_bytes():
    """~75% of physical VMEM: ~96 MiB on v5e/v6e (128 MiB), ~48 MiB on v7x (64 MiB)."""
    try:
        cap = pltpu.get_tpu_info().vmem_capacity_bytes
    except Exception:
        cap = 64 * 1024 * 1024
    return int(cap) * 3 // 4


def multi_head_attention(x, params, *, num_heads, batch_tile=None,
                         compute_dtype=jnp.bfloat16, approx_recip=True,
                         vmem_limit_bytes=None):
    """x: (B, N, E).  params: weights [in,out] and biases [1,out] as in the module."""
    B, N, E = x.shape
    assert E % num_heads == 0
    D = E // num_heads

    bt = _default_batch_tile(B) if batch_tile is None else batch_tile
    assert B % bt == 0
    if vmem_limit_bytes is None:
        vmem_limit_bytes = _default_vmem_limit_bytes()

    f32 = jnp.float32
    wq = params["wq"].astype(compute_dtype); bq = params["bq"].astype(f32)
    wk = params["wk"].astype(compute_dtype); bk = params["bk"].astype(f32)
    wv = params["wv"].astype(compute_dtype); bv = params["bv"].astype(f32)
    wp = params["wp"].astype(compute_dtype); bp = params["bp"].astype(f32)

    kernel = functools.partial(_mha_kernel, num_heads=num_heads, head_dim=D,
                               inv_scale=1.0 / math.sqrt(E),
                               approx_recip=approx_recip)

    xo_spec = pl.BlockSpec((bt, N, E), lambda i: (i, 0, 0))
    # Grid-invariant weights/biases: single-buffer (no benefit from double-buffering).
    w_spec = pl.BlockSpec((E, E), lambda i: (0, 0), pipeline_mode=pl.Buffered(1))
    b_spec = pl.BlockSpec((1, E), lambda i: (0, 0), pipeline_mode=pl.Buffered(1))

    return pl.pallas_call(
        kernel,
        out_shape=jax.ShapeDtypeStruct((B, N, E), x.dtype),
        grid_spec=pltpu.PrefetchScalarGridSpec(
            num_scalar_prefetch=0,
            grid=(B // bt,),
            in_specs=[
                xo_spec,             # x
                w_spec, b_spec,      # Wq, bq
                w_spec, b_spec,      # Wk, bk
                w_spec, b_spec,      # Wv, bv
                w_spec, b_spec,      # Wp, bp
            ],
            out_specs=xo_spec,
            scratch_shapes=[pltpu.VMEM((bt, N, E), compute_dtype)],  # concat ctx
        ),
        compiler_params=pltpu.CompilerParams(
            dimension_semantics=("parallel",),
            vmem_limit_bytes=vmem_limit_bytes),
    )(x.astype(compute_dtype), wq, bq, wk, bk, wv, bv, wp, bp)


def _reference(x, params, num_heads):
    """Pure-JAX reference mirroring the PyTorch forward."""
    B, N, E = x.shape
    D = E // num_heads

    def lin(t, w, b):
        return t @ w + b

    def split(t):  # b n (h d) -> b h n d
        return t.reshape(B, N, num_heads, D).transpose(0, 2, 1, 3)

    q = split(lin(x, params["wq"], params["bq"]))
    k = split(lin(x, params["wk"], params["bk"]))
    v = split(lin(x, params["wv"], params["bv"]))
    energy = jnp.einsum("bhqd,bhkd->bhqk", q, k)
    att = jax.nn.softmax(energy / (E ** 0.5), axis=-1)
    out = jnp.einsum("bhal,bhlv->bhav", att, v)
    out = out.transpose(0, 2, 1, 3).reshape(B, N, E)
    return lin(out, params["wp"], params["bp"])


if __name__ == "__main__":
    B, N, E, H = 2, 8, 32, 4      # batch=2, seq=8, emb_size=32, num_heads=4

    key = jax.random.PRNGKey(0)
    keys = jax.random.split(key, 9)
    scale = 1.0 / math.sqrt(E)

    params = {
        "wq": jax.random.normal(keys[0], (E, E), jnp.float32) * scale,
        "bq": jax.random.normal(keys[1], (1, E), jnp.float32) * 0.1,
        "wk": jax.random.normal(keys[2], (E, E), jnp.float32) * scale,
        "bk": jax.random.normal(keys[3], (1, E), jnp.float32) * 0.1,
        "wv": jax.random.normal(keys[4], (E, E), jnp.float32) * scale,
        "bv": jax.random.normal(keys[5], (1, E), jnp.float32) * 0.1,
        "wp": jax.random.normal(keys[6], (E, E), jnp.float32) * scale,
        "bp": jax.random.normal(keys[7], (1, E), jnp.float32) * 0.1,
    }
    x = jax.random.normal(keys[8], (B, N, E), jnp.float32)

    ref = _reference(x, params, H)

    # Exact variant (f32 compute, exact reciprocal): tight check vs the reference.
    out_exact = multi_head_attention(x, params, num_heads=H,
                                     compute_dtype=jnp.float32,
                                     approx_recip=False)
    out_exact = jax.block_until_ready(out_exact)
    assert out_exact.shape == (B, N, E)
    assert jnp.allclose(out_exact, ref, atol=1e-4, rtol=1e-4), "mismatch (exact)"

    # Production default (bf16 MXU operands + approx EUP reciprocal): looser
    # tolerance purely from the reduced operand precision (f32 accumulation kept).
    out = multi_head_attention(x, params, num_heads=H)
    out = jax.block_until_ready(out)
    assert out.shape == (B, N, E)
    assert jnp.allclose(out, ref, atol=1e-1, rtol=5e-2), "mismatch (bf16/approx)"

    print("KERNEL_OK")
</pallas_src>

<mosaic_0001>
module attributes {stable_mosaic.version = 11 : i64} {
  func.func @_mha_kernel(%arg0: i32, %arg1: memref<1x8x32xf32, #tpu.memory_space<vmem>>, %arg2: memref<32x32xf32, #tpu.memory_space<vmem>>, %arg3: memref<1x32xf32, #tpu.memory_space<vmem>>, %arg4: memref<32x32xf32, #tpu.memory_space<vmem>>, %arg5: memref<1x32xf32, #tpu.memory_space<vmem>>, %arg6: memref<32x32xf32, #tpu.memory_space<vmem>>, %arg7: memref<1x32xf32, #tpu.memory_space<vmem>>, %arg8: memref<32x32xf32, #tpu.memory_space<vmem>>, %arg9: memref<1x32xf32, #tpu.memory_space<vmem>>, %arg10: memref<1x8x32xf32, #tpu.memory_space<vmem>>, %arg11: memref<1x8x32xf32, #tpu.memory_space<vmem>>) attributes {dimension_semantics = [#tpu.dimension_semantics<parallel>], iteration_bounds = array<i64: 2>, scalar_prefetch = 0 : i64, scratch_operands = 1 : i64, tpu.core_type = #tpu.core_type<tc>, window_params = [{transform_indices = @transform_0, window_bounds = array<i64: 1, 8, 32>}, {pipeline_mode = #tpu.pipeline_mode<synchronous>, transform_indices = @transform_1, window_bounds = array<i64: 32, 32>}, {pipeline_mode = #tpu.pipeline_mode<synchronous>, transform_indices = @transform_2, window_bounds = array<i64: 1, 32>}, {pipeline_mode = #tpu.pipeline_mode<synchronous>, transform_indices = @transform_3, window_bounds = array<i64: 32, 32>}, {pipeline_mode = #tpu.pipeline_mode<synchronous>, transform_indices = @transform_4, window_bounds = array<i64: 1, 32>}, {pipeline_mode = #tpu.pipeline_mode<synchronous>, transform_indices = @transform_5, window_bounds = array<i64: 32, 32>}, {pipeline_mode = #tpu.pipeline_mode<synchronous>, transform_indices = @transform_6, window_bounds = array<i64: 1, 32>}, {pipeline_mode = #tpu.pipeline_mode<synchronous>, transform_indices = @transform_7, window_bounds = array<i64: 32, 32>}, {pipeline_mode = #tpu.pipeline_mode<synchronous>, transform_indices = @transform_8, window_bounds = array<i64: 1, 32>}, {transform_indices = @transform_9, window_bounds = array<i64: 1, 8, 32>}]} {
    %c0 = arith.constant 0 : index
    %c0_0 = arith.constant 0 : index
    %c0_1 = arith.constant 0 : index
    %0 = vector.load %arg1[%c0, %c0_0, %c0_1] : memref<1x8x32xf32, #tpu.memory_space<vmem>>, vector<1x8x32xf32>
    %1 = vector.shape_cast %0 : vector<1x8x32xf32> to vector<8x32xf32>
    %c0_2 = arith.constant 0 : index
    %c0_3 = arith.constant 0 : index
    %2 = vector.load %arg2[%c0_2, %c0_3] : memref<32x32xf32, #tpu.memory_space<vmem>>, vector<32x32xf32>
    %cst = arith.constant dense<0.000000e+00> : vector<8x32xf32>
    %3 = tpu.matmul %1, %2, %cst {dimension_numbers = #tpu.dot_dimension_numbers<[1], [0], [0], [1], [0, 0, 1, 1], [], []>} : vector<8x32xf32>, vector<32x32xf32>, vector<8x32xf32> -> vector<8x32xf32>
    %c0_4 = arith.constant 0 : index
    %c0_5 = arith.constant 0 : index
    %4 = vector.load %arg3[%c0_4, %c0_5] : memref<1x32xf32, #tpu.memory_space<vmem>>, vector<1x32xf32>
    %5 = vector.broadcast %4 : vector<1x32xf32> to vector<8x32xf32>
    %6 = arith.addf %3, %5 : vector<8x32xf32>
    %cst_6 = arith.constant 0.176776692 : f32
    %7 = vector.broadcast %cst_6 : f32 to vector<8x32xf32>
    %8 = arith.mulf %6, %7 : vector<8x32xf32>
    %c0_7 = arith.constant 0 : index
    %c0_8 = arith.constant 0 : index
    %9 = vector.load %arg4[%c0_7, %c0_8] : memref<32x32xf32, #tpu.memory_space<vmem>>, vector<32x32xf32>
    %cst_9 = arith.constant dense<0.000000e+00> : vector<8x32xf32>
    %10 = tpu.matmul %1, %9, %cst_9 {dimension_numbers = #tpu.dot_dimension_numbers<[1], [0], [0], [1], [0, 0, 1, 1], [], []>} : vector<8x32xf32>, vector<32x32xf32>, vector<8x32xf32> -> vector<8x32xf32>
    %c0_10 = arith.constant 0 : index
    %c0_11 = arith.constant 0 : index
    %11 = vector.load %arg5[%c0_10, %c0_11] : memref<1x32xf32, #tpu.memory_space<vmem>>, vector<1x32xf32>
    %12 = vector.broadcast %11 : vector<1x32xf32> to vector<8x32xf32>
    %13 = arith.addf %10, %12 : vector<8x32xf32>
    %c0_12 = arith.constant 0 : index
    %c0_13 = arith.constant 0 : index
    %14 = vector.load %arg6[%c0_12, %c0_13] : memref<32x32xf32, #tpu.memory_space<vmem>>, vector<32x32xf32>
    %cst_14 = arith.constant dense<0.000000e+00> : vector<8x32xf32>
    %15 = tpu.matmul %1, %14, %cst_14 {dimension_numbers = #tpu.dot_dimension_numbers<[1], [0], [0], [1], [0, 0, 1, 1], [], []>} : vector<8x32xf32>, vector<32x32xf32>, vector<8x32xf32> -> vector<8x32xf32>
    %c0_15 = arith.constant 0 : index
    %c0_16 = arith.constant 0 : index
    %16 = vector.load %arg7[%c0_15, %c0_16] : memref<1x32xf32, #tpu.memory_space<vmem>>, vector<1x32xf32>
    %17 = vector.broadcast %16 : vector<1x32xf32> to vector<8x32xf32>
    %18 = arith.addf %15, %17 : vector<8x32xf32>
    %19 = vector.shape_cast %8 : vector<8x32xf32> to vector<1x8x32xf32>
    %20 = vector.shape_cast %13 : vector<8x32xf32> to vector<1x8x32xf32>
    %21 = vector.shape_cast %18 : vector<8x32xf32> to vector<1x8x32xf32>
    %22 = vector.extract_strided_slice %19 {offsets = [0, 0, 0], sizes = [1, 8, 8], strides = [1, 1, 1]} : vector<1x8x32xf32> to vector<1x8x8xf32>
    %23 = vector.extract_strided_slice %20 {offsets = [0, 0, 0], sizes = [1, 8, 8], strides = [1, 1, 1]} : vector<1x8x32xf32> to vector<1x8x8xf32>
    %24 = vector.extract_strided_slice %21 {offsets = [0, 0, 0], sizes = [1, 8, 8], strides = [1, 1, 1]} : vector<1x8x32xf32> to vector<1x8x8xf32>
    "tpu.trace_start"() <{level = 10 : i32, message = "bqd,bkd->bqk"}> : () -> ()
    %cst_17 = arith.constant dense<0.000000e+00> : vector<1x8x8xf32>
    %25 = tpu.matmul %22, %23, %cst_17 {dimension_numbers = #tpu.dot_dimension_numbers<[2], [2], [1], [1], [0, 0, 0, 1, 1, 1], [0], [0]>} : vector<1x8x8xf32>, vector<1x8x8xf32>, vector<1x8x8xf32> -> vector<1x8x8xf32>
    "tpu.trace_stop"() : () -> ()
    %cst_18 = arith.constant dense<0xFF800000> : vector<1x8xf32>
    %26 = vector.multi_reduction <maximumf>, %25, %cst_18 [2] : vector<1x8x8xf32> to vector<1x8xf32>
    %27 = vector.shape_cast %26 : vector<1x8xf32> to vector<1x8x1xf32>
    %28 = vector.broadcast %27 : vector<1x8x1xf32> to vector<1x8x8xf32>
    %29 = arith.subf %25, %28 : vector<1x8x8xf32>
    %30 = math.exp %29 : vector<1x8x8xf32>
    %cst_19 = arith.constant dense<0.000000e+00> : vector<1x8xf32>
    %31 = vector.multi_reduction <add>, %30, %cst_19 [2] : vector<1x8x8xf32> to vector<1x8xf32>
    %32 = vector.shape_cast %31 : vector<1x8xf32> to vector<1x8x1xf32>
    %33 = tpu.reciprocal %32 : vector<1x8x1xf32> -> vector<1x8x1xf32>
    %34 = vector.broadcast %33 : vector<1x8x1xf32> to vector<1x8x8xf32>
    %35 = arith.mulf %30, %34 : vector<1x8x8xf32>
    "tpu.trace_start"() <{level = 10 : i32, message = "bqk,bkd->bqd"}> : () -> ()
    %cst_20 = arith.constant dense<0.000000e+00> : vector<1x8x8xf32>
    %36 = tpu.matmul %35, %24, %cst_20 {dimension_numbers = #tpu.dot_dimension_numbers<[2], [1], [1], [2], [0, 0, 0, 1, 1, 2], [0], [0]>} : vector<1x8x8xf32>, vector<1x8x8xf32>, vector<1x8x8xf32> -> vector<1x8x8xf32>
    "tpu.trace_stop"() : () -> ()
    %c0_21 = arith.constant 0 : index
    %c0_22 = arith.constant 0 : index
    %c0_23 = arith.constant 0 : index
    %37 = vector.load %arg11[%c0_21, %c0_22, %c0_23] : memref<1x8x32xf32, #tpu.memory_space<vmem>>, vector<1x8x8xf32>
    tpu.vector_store %arg11[%c0_21, %c0_22, %c0_23], %36 {strides = array<i32>} : memref<1x8x32xf32, #tpu.memory_space<vmem>>, vector<1x8x8xf32>,
    %38 = vector.extract_strided_slice %19 {offsets = [0, 0, 8], sizes = [1, 8, 8], strides = [1, 1, 1]} : vector<1x8x32xf32> to vector<1x8x8xf32>
    %39 = vector.extract_strided_slice %20 {offsets = [0, 0, 8], sizes = [1, 8, 8], strides = [1, 1, 1]} : vector<1x8x32xf32> to vector<1x8x8xf32>
    %40 = vector.extract_strided_slice %21 {offsets = [0, 0, 8], sizes = [1, 8, 8], strides = [1, 1, 1]} : vector<1x8x32xf32> to vector<1x8x8xf32>
    "tpu.trace_start"() <{level = 10 : i32, message = "bqd,bkd->bqk"}> : () -> ()
    %cst_24 = arith.constant dense<0.000000e+00> : vector<1x8x8xf32>
    %41 = tpu.matmul %38, %39, %cst_24 {dimension_numbers = #tpu.dot_dimension_numbers<[2], [2], [1], [1], [0, 0, 0, 1, 1, 1], [0], [0]>} : vector<1x8x8xf32>, vector<1x8x8xf32>, vector<1x8x8xf32> -> vector<1x8x8xf32>
    "tpu.trace_stop"() : () -> ()
    %cst_25 = arith.constant dense<0xFF800000> : vector<1x8xf32>
    %42 = vector.multi_reduction <maximumf>, %41, %cst_25 [2] : vector<1x8x8xf32> to vector<1x8xf32>
    %43 = vector.shape_cast %42 : vector<1x8xf32> to vector<1x8x1xf32>
    %44 = vector.broadcast %43 : vector<1x8x1xf32> to vector<1x8x8xf32>
    %45 = arith.subf %41, %44 : vector<1x8x8xf32>
    %46 = math.exp %45 : vector<1x8x8xf32>
    %cst_26 = arith.constant dense<0.000000e+00> : vector<1x8xf32>
    %47 = vector.multi_reduction <add>, %46, %cst_26 [2] : vector<1x8x8xf32> to vector<1x8xf32>
    %48 = vector.shape_cast %47 : vector<1x8xf32> to vector<1x8x1xf32>
    %49 = tpu.reciprocal %48 : vector<1x8x1xf32> -> vector<1x8x1xf32>
    %50 = vector.broadcast %49 : vector<1x8x1xf32> to vector<1x8x8xf32>
    %51 = arith.mulf %46, %50 : vector<1x8x8xf32>
    "tpu.trace_start"() <{level = 10 : i32, message = "bqk,bkd->bqd"}> : () -> ()
    %cst_27 = arith.constant dense<0.000000e+00> : vector<1x8x8xf32>
    %52 = tpu.matmul %51, %40, %cst_27 {dimension_numbers = #tpu.dot_dimension_numbers<[2], [1], [1], [2], [0, 0, 0, 1, 1, 2], [0], [0]>} : vector<1x8x8xf32>, vector<1x8x8xf32>, vector<1x8x8xf32> -> vector<1x8x8xf32>
    "tpu.trace_stop"() : () -> ()
    %c0_28 = arith.constant 0 : index
    %c0_29 = arith.constant 0 : index
    %c8 = arith.constant 8 : index
    %53 = vector.load %arg11[%c0_28, %c0_29, %c8] : memref<1x8x32xf32, #tpu.memory_space<vmem>>, vector<1x8x8xf32>
    tpu.vector_store %arg11[%c0_28, %c0_29, %c8], %52 {strides = array<i32>} : memref<1x8x32xf32, #tpu.memory_space<vmem>>, vector<1x8x8xf32>,
    %54 = vector.extract_strided_slice %19 {offsets = [0, 0, 16], sizes = [1, 8, 8], strides = [1, 1, 1]} : vector<1x8x32xf32> to vector<1x8x8xf32>
    %55 = vector.extract_strided_slice %20 {offsets = [0, 0, 16], sizes = [1, 8, 8], strides = [1, 1, 1]} : vector<1x8x32xf32> to vector<1x8x8xf32>
    %56 = vector.extract_strided_slice %21 {offsets = [0, 0, 16], sizes = [1, 8, 8], strides = [1, 1, 1]} : vector<1x8x32xf32> to vector<1x8x8xf32>
    "tpu.trace_start"() <{level = 10 : i32, message = "bqd,bkd->bqk"}> : () -> ()
    %cst_30 = arith.constant dense<0.000000e+00> : vector<1x8x8xf32>
    %57 = tpu.matmul %54, %55, %cst_30 {dimension_numbers = #tpu.dot_dimension_numbers<[2], [2], [1], [1], [0, 0, 0, 1, 1, 1], [0], [0]>} : vector<1x8x8xf32>, vector<1x8x8xf32>, vector<1x8x8xf32> -> vector<1x8x8xf32>
    "tpu.trace_stop"() : () -> ()
    %cst_31 = arith.constant dense<0xFF800000> : vector<1x8xf32>
    %58 = vector.multi_reduction <maximumf>, %57, %cst_31 [2] : vector<1x8x8xf32> to vector<1x8xf32>
    %59 = vector.shape_cast %58 : vector<1x8xf32> to vector<1x8x1xf32>
    %60 = vector.broadcast %59 : vector<1x8x1xf32> to vector<1x8x8xf32>
    %61 = arith.subf %57, %60 : vector<1x8x8xf32>
    %62 = math.exp %61 : vector<1x8x8xf32>
    %cst_32 = arith.constant dense<0.000000e+00> : vector<1x8xf32>
    %63 = vector.multi_reduction <add>, %62, %cst_32 [2] : vector<1x8x8xf32> to vector<1x8xf32>
    %64 = vector.shape_cast %63 : vector<1x8xf32> to vector<1x8x1xf32>
    %65 = tpu.reciprocal %64 : vector<1x8x1xf32> -> vector<1x8x1xf32>
    %66 = vector.broadcast %65 : vector<1x8x1xf32> to vector<1x8x8xf32>
    %67 = arith.mulf %62, %66 : vector<1x8x8xf32>
    "tpu.trace_start"() <{level = 10 : i32, message = "bqk,bkd->bqd"}> : () -> ()
    %cst_33 = arith.constant dense<0.000000e+00> : vector<1x8x8xf32>
    %68 = tpu.matmul %67, %56, %cst_33 {dimension_numbers = #tpu.dot_dimension_numbers<[2], [1], [1], [2], [0, 0, 0, 1, 1, 2], [0], [0]>} : vector<1x8x8xf32>, vector<1x8x8xf32>, vector<1x8x8xf32> -> vector<1x8x8xf32>
    "tpu.trace_stop"() : () -> ()
    %c0_34 = arith.constant 0 : index
    %c0_35 = arith.constant 0 : index
    %c16 = arith.constant 16 : index
    %69 = vector.load %arg11[%c0_34, %c0_35, %c16] : memref<1x8x32xf32, #tpu.memory_space<vmem>>, vector<1x8x8xf32>
    tpu.vector_store %arg11[%c0_34, %c0_35, %c16], %68 {strides = array<i32>} : memref<1x8x32xf32, #tpu.memory_space<vmem>>, vector<1x8x8xf32>,
    %70 = vector.extract_strided_slice %19 {offsets = [0, 0, 24], sizes = [1, 8, 8], strides = [1, 1, 1]} : vector<1x8x32xf32> to vector<1x8x8xf32>
    %71 = vector.extract_strided_slice %20 {offsets = [0, 0, 24], sizes = [1, 8, 8], strides = [1, 1, 1]} : vector<1x8x32xf32> to vector<1x8x8xf32>
    %72 = vector.extract_strided_slice %21 {offsets = [0, 0, 24], sizes = [1, 8, 8], strides = [1, 1, 1]} : vector<1x8x32xf32> to vector<1x8x8xf32>
    "tpu.trace_start"() <{level = 10 : i32, message = "bqd,bkd->bqk"}> : () -> ()
    %cst_36 = arith.constant dense<0.000000e+00> : vector<1x8x8xf32>
    %73 = tpu.matmul %70, %71, %cst_36 {dimension_numbers = #tpu.dot_dimension_numbers<[2], [2], [1], [1], [0, 0, 0, 1, 1, 1], [0], [0]>} : vector<1x8x8xf32>, vector<1x8x8xf32>, vector<1x8x8xf32> -> vector<1x8x8xf32>
    "tpu.trace_stop"() : () -> ()
    %cst_37 = arith.constant dense<0xFF800000> : vector<1x8xf32>
    %74 = vector.multi_reduction <maximumf>, %73, %cst_37 [2] : vector<1x8x8xf32> to vector<1x8xf32>
    %75 = vector.shape_cast %74 : vector<1x8xf32> to vector<1x8x1xf32>
    %76 = vector.broadcast %75 : vector<1x8x1xf32> to vector<1x8x8xf32>
    %77 = arith.subf %73, %76 : vector<1x8x8xf32>
    %78 = math.exp %77 : vector<1x8x8xf32>
    %cst_38 = arith.constant dense<0.000000e+00> : vector<1x8xf32>
    %79 = vector.multi_reduction <add>, %78, %cst_38 [2] : vector<1x8x8xf32> to vector<1x8xf32>
    %80 = vector.shape_cast %79 : vector<1x8xf32> to vector<1x8x1xf32>
    %81 = tpu.reciprocal %80 : vector<1x8x1xf32> -> vector<1x8x1xf32>
    %82 = vector.broadcast %81 : vector<1x8x1xf32> to vector<1x8x8xf32>
    %83 = arith.mulf %78, %82 : vector<1x8x8xf32>
    "tpu.trace_start"() <{level = 10 : i32, message = "bqk,bkd->bqd"}> : () -> ()
    %cst_39 = arith.constant dense<0.000000e+00> : vector<1x8x8xf32>
    %84 = tpu.matmul %83, %72, %cst_39 {dimension_numbers = #tpu.dot_dimension_numbers<[2], [1], [1], [2], [0, 0, 0, 1, 1, 2], [0], [0]>} : vector<1x8x8xf32>, vector<1x8x8xf32>, vector<1x8x8xf32> -> vector<1x8x8xf32>
    "tpu.trace_stop"() : () -> ()
    %c0_40 = arith.constant 0 : index
    %c0_41 = arith.constant 0 : index
    %c24 = arith.constant 24 : index
    %85 = vector.load %arg11[%c0_40, %c0_41, %c24] : memref<1x8x32xf32, #tpu.memory_space<vmem>>, vector<1x8x8xf32>
    tpu.vector_store %arg11[%c0_40, %c0_41, %c24], %84 {strides = array<i32>} : memref<1x8x32xf32, #tpu.memory_space<vmem>>, vector<1x8x8xf32>,
    %c0_42 = arith.constant 0 : index
    %c0_43 = arith.constant 0 : index
    %c0_44 = arith.constant 0 : index
    %86 = vector.load %arg11[%c0_42, %c0_43, %c0_44] : memref<1x8x32xf32, #tpu.memory_space<vmem>>, vector<1x8x32xf32>
    %87 = vector.shape_cast %86 : vector<1x8x32xf32> to vector<8x32xf32>
    %c0_45 = arith.constant 0 : index
    %c0_46 = arith.constant 0 : index
    %88 = vector.load %arg8[%c0_45, %c0_46] : memref<32x32xf32, #tpu.memory_space<vmem>>, vector<32x32xf32>
    %cst_47 = arith.constant dense<0.000000e+00> : vector<8x32xf32>
    %89 = tpu.matmul %87, %88, %cst_47 {dimension_numbers = #tpu.dot_dimension_numbers<[1], [0], [0], [1], [0, 0, 1, 1], [], []>} : vector<8x32xf32>, vector<32x32xf32>, vector<8x32xf32> -> vector<8x32xf32>
    %c0_48 = arith.constant 0 : index
    %c0_49 = arith.constant 0 : index
    %90 = vector.load %arg9[%c0_48, %c0_49] : memref<1x32xf32, #tpu.memory_space<vmem>>, vector<1x32xf32>
    %91 = vector.broadcast %90 : vector<1x32xf32> to vector<8x32xf32>
    %92 = arith.addf %89, %91 : vector<8x32xf32>
    %93 = vector.shape_cast %92 : vector<8x32xf32> to vector<1x8x32xf32>
    %c0_50 = arith.constant 0 : index
    %c0_51 = arith.constant 0 : index
    %c0_52 = arith.constant 0 : index
    %94 = vector.load %arg10[%c0_50, %c0_51, %c0_52] : memref<1x8x32xf32, #tpu.memory_space<vmem>>, vector<1x8x32xf32>
    tpu.vector_store %arg10[%c0_50, %c0_51, %c0_52], %93 {strides = array<i32>} : memref<1x8x32xf32, #tpu.memory_space<vmem>>, vector<1x8x32xf32>,
    return
  }
  func.func @transform_0(%arg0: i32) -> (i32, i32, i32) {
    %c0_i32 = arith.constant 0 : i32
    %c0_i32_0 = arith.constant 0 : i32
    %c0_i32_1 = arith.constant 0 : i32
    return %arg0, %c0_i32, %c0_i32_0 : i32, i32, i32
  }
  func.func @transform_1(%arg0: i32) -> (i32, i32) {
    %c0_i32 = arith.constant 0 : i32
    %c0_i32_0 = arith.constant 0 : i32
    %c0_i32_1 = arith.constant 0 : i32
    return %c0_i32, %c0_i32_0 : i32, i32
  }
  func.func @transform_2(%arg0: i32) -> (i32, i32) {
    %c0_i32 = arith.constant 0 : i32
    %c0_i32_0 = arith.constant 0 : i32
    %c0_i32_1 = arith.constant 0 : i32
    return %c0_i32, %c0_i32_0 : i32, i32
  }
  func.func @transform_3(%arg0: i32) -> (i32, i32) {
    %c0_i32 = arith.constant 0 : i32
    %c0_i32_0 = arith.constant 0 : i32
    %c0_i32_1 = arith.constant 0 : i32
    return %c0_i32, %c0_i32_0 : i32, i32
  }
  func.func @transform_4(%arg0: i32) -> (i32, i32) {
    %c0_i32 = arith.constant 0 : i32
    %c0_i32_0 = arith.constant 0 : i32
    %c0_i32_1 = arith.constant 0 : i32
    return %c0_i32, %c0_i32_0 : i32, i32
  }
  func.func @transform_5(%arg0: i32) -> (i32, i32) {
    %c0_i32 = arith.constant 0 : i32
    %c0_i32_0 = arith.constant 0 : i32
    %c0_i32_1 = arith.constant 0 : i32
    return %c0_i32, %c0_i32_0 : i32, i32
  }
  func.func @transform_6(%arg0: i32) -> (i32, i32) {
    %c0_i32 = arith.constant 0 : i32
    %c0_i32_0 = arith.constant 0 : i32
    %c0_i32_1 = arith.constant 0 : i32
    return %c0_i32, %c0_i32_0 : i32, i32
  }
  func.func @transform_7(%arg0: i32) -> (i32, i32) {
    %c0_i32 = arith.constant 0 : i32
    %c0_i32_0 = arith.constant 0 : i32
    %c0_i32_1 = arith.constant 0 : i32
    return %c0_i32, %c0_i32_0 : i32, i32
  }
  func.func @transform_8(%arg0: i32) -> (i32, i32) {
    %c0_i32 = arith.constant 0 : i32
    %c0_i32_0 = arith.constant 0 : i32
    %c0_i32_1 = arith.constant 0 : i32
    return %c0_i32, %c0_i32_0 : i32, i32
  }
  func.func @transform_9(%arg0: i32) -> (i32, i32, i32) {
    %c0_i32 = arith.constant 0 : i32
    %c0_i32_0 = arith.constant 0 : i32
    %c0_i32_1 = arith.constant 0 : i32
    return %arg0, %c0_i32, %c0_i32_0 : i32, i32, i32
  }
}

</mosaic_0001>

<llo_original>
// kernel: tpu_custom_call.1
$region0: #{tpu_custom_call.1}
  #allocation0 [shape = 'u32[]', space=smem, size = 0x4, offset = 0x4, fixed_abs, tag = 'smem constant byte address 0x4 - core index']
  #allocation1 [shape = 'u32[72,128]{1,0:T(1,128)}', space=vmem, size = 0x9000, scoped, tag = 'internal scratch']
  #allocation2 [shape = 'f32[1,8,32]{2,1,0:T(8,128)}', space=vmem, size = 0x1000, scoped, tag = 'scratch operand']
  %s0 = inlined_call_operand.hbm [shape: f32[2,8,32], index: 0, kind: input, shape index: {}]
  %s1 = inlined_call_operand.hbm [shape: f32[32,32], index: 1, kind: input, shape index: {}]
  %s2 = inlined_call_operand.vmem [shape: f32[1,32], index: 2, kind: input, shape index: {}]
  %s3 = inlined_call_operand.hbm [shape: f32[32,32], index: 3, kind: input, shape index: {}]
  %s4 = inlined_call_operand.vmem [shape: f32[1,32], index: 4, kind: input, shape index: {}]
  %s5 = inlined_call_operand.hbm [shape: f32[32,32], index: 5, kind: input, shape index: {}]
  %s6 = inlined_call_operand.vmem [shape: f32[1,32], index: 6, kind: input, shape index: {}]
  %s7 = inlined_call_operand.hbm [shape: f32[32,32], index: 7, kind: input, shape index: {}]
  %s8 = inlined_call_operand.vmem [shape: f32[1,32], index: 8, kind: input, shape index: {}]
  %s9 = inlined_call_operand.hbm [shape: f32[2,8,32], index: 9, kind: output, shape index: {}]
  %s10 = sld [smem:[#allocation0]]
  $region89: #{tpu_custom_call.1} parent=0
    _
  %s12 = ssub.s32 1, %s10
  %s13 = scalar_select 0, %s12, %s10
  $region1: #{tpu_custom_call.1} parent=0
    #allocation3 [shape = 'u8[8192]{0}', space=vmem, size = 0x2000, scoped, tag = 'input window, operand 0']
    #allocation4 [shape = 's32[2]{0}', space=sflag, size = 0x8, scoped, tag = 'scoped memory for tpu_custom_call.1']
    #allocation5 [shape = 's32[2]{0}', space=sflag, size = 0x8, scoped, tag = 'scoped memory for tpu_custom_call.1']
    #allocation6 [shape = 'u8[16384]{0}', space=vmem, size = 0x4000, scoped, tag = 'input window, operand 1, single buffered']
    #allocation7 [shape = 's32[1]{0}', space=sflag, size = 0x4, scoped, tag = 'scoped memory for tpu_custom_call.1']
    #allocation8 [shape = 'u8[16384]{0}', space=vmem, size = 0x4000, scoped, tag = 'input window, operand 3, single buffered']
    #allocation9 [shape = 'u8[16384]{0}', space=vmem, size = 0x4000, scoped, tag = 'input window, operand 5, single buffered']
    #allocation10 [shape = 's32[1]{0}', space=sflag, size = 0x4, scoped, tag = 'scoped memory for tpu_custom_call.1']
    #allocation11 [shape = 'u8[16384]{0}', space=vmem, size = 0x4000, scoped, tag = 'input window, operand 7, single buffered']
    #allocation12 [shape = 'u8[8192]{0}', space=vmem, size = 0x2000, scoped, tag = 'output window, operand 0']
    %14 = vsyncpa [#allocation4], 0
    %s15 = scalar_lea.sflag [#allocation4], 1
    %16 = vsyncpa %s15, 0
    %17 = vsyncpa [#allocation7], 0
    %18 = vsyncpa [#allocation10], 0
    %19 = vsyncpa [#allocation5], 0
    %s20 = scalar_lea.sflag [#allocation5], 1
    %21 = vsyncpa %s20, 0
    loop: start=0, step=1, limit=4
    $region2: #{tpu_custom_call.1} parent=1 // loop_pre_header
      _
    $region3: #{tpu_custom_call.1} parent=1 // loop_header
      %s23 = sphi 0, %s27
      %p24 = scmp.ge.s32.totalorder %s23, 4
      %s33 = sphi 0, %s35
      %s36 = sphi 0, %s33
      %s37 = sphi 0, %s36
      %s53 = sphi 0, %s37
      %s57 = sphi 0, %s57
      %s59 = sphi 0, %s57
      %s60 = sphi 0, %s59
      %s74 = sphi 0, %s60
      %s78 = sphi 0, %s78
      %s80 = sphi 0, %s78
      %s81 = sphi 0, %s80
      %s95 = sphi 0, %s81
      %s99 = sphi 0, %s99
      %s101 = sphi 0, %s99
      %s102 = sphi 0, %s101
      %s116 = sphi 0, %s102
      %s120 = sphi 0, %s120
      %s122 = sphi 0, %s120
      %s123 = sphi 0, %s122
      %s137 = sphi 0, %s123
      %s141 = sphi 0, %s141
      %s143 = sphi 0, %s141
      %s144 = sphi 0, %s143
      %s158 = sphi 0, %s144
      %s162 = sphi 0, %s162
      %s164 = sphi 0, %s162
      %s165 = sphi 0, %s164
      %s179 = sphi 0, %s165
      %s183 = sphi 0, %s183
      %s185 = sphi 0, %s183
      %s186 = sphi 0, %s185
      %s200 = sphi 0, %s186
      %s204 = sphi 0, %s204
      %s206 = sphi 0, %s204
      %s207 = sphi 0, %s206
      %s221 = sphi 0, %s207
      %s227 = sphi 0, %s229
      %s230 = sphi 0, %s227
      %s231 = sphi 0, %s230
      %s247 = sphi 0, %s231
    $region4: #{tpu_custom_call.1} parent=1 // loop_header_branch
      %26 = sbr.rel (%p24) target = $region8
    $region5: #{tpu_custom_call.1} parent=1 // loop_body
      %s28 = ssub.s32 %s23, 1
      %s29 = ssub.s32 %s23, 2
      %s30 = sadd.s32 %s23, 1
      %s31 = ssub.s32 %s23, %s30
      %p32 = scmp.eq.s32.totalorder %s31, 0
      %s34 = sadd.s32 %s33, 1
      %s35 = scalar_select %p32, %s33, %s34
      %p38 = pneg %p32
      %p39 = scmp.eq.s32.totalorder %s23, 1
      %p40 = por %p38, %p39
      %p41 = scmp.ne.s32.totalorder %s33, %s36
      %p42 = scmp.eq.s32.totalorder %s23, 0
      %p43 = por %p41, %p42
      %p44 = scmp.ne.s32.totalorder %s33, %s36
      %p45 = scmp.eq.s32.totalorder %s28, 1
      %p46 = por %p44, %p45
      %p47 = scmp.ne.s32.totalorder %s36, %s37
      %p48 = scmp.eq.s32.totalorder %s28, 0
      %p49 = por %p47, %p48
      %p50 = scmp.ne.s32.totalorder %s36, %s37
      %p51 = scmp.eq.s32.totalorder %s29, 1
      %p52 = por %p50, %p51
      %p54 = scmp.ne.s32.totalorder %s37, %s53
      %p55 = scmp.eq.s32.totalorder %s29, 0
      %p56 = por %p54, %p55
      %s58 = sadd.s32 %s57, 1
      %p61 = scmp.eq.s32.totalorder %s23, 1
      %p62 = scmp.ne.s32.totalorder %s57, %s59
      %p63 = scmp.eq.s32.totalorder %s23, 0
      %p64 = por %p62, %p63
      %p65 = scmp.ne.s32.totalorder %s57, %s59
      %p66 = scmp.eq.s32.totalorder %s28, 1
      %p67 = por %p65, %p66
      %p68 = scmp.ne.s32.totalorder %s59, %s60
      %p69 = scmp.eq.s32.totalorder %s28, 0
      %p70 = por %p68, %p69
      %p71 = scmp.ne.s32.totalorder %s59, %s60
      %p72 = scmp.eq.s32.totalorder %s29, 1
      %p73 = por %p71, %p72
      %p75 = scmp.ne.s32.totalorder %s60, %s74
      %p76 = scmp.eq.s32.totalorder %s29, 0
      %p77 = por %p75, %p76
      %s79 = sadd.s32 %s78, 1
      %p82 = scmp.eq.s32.totalorder %s23, 1
      %p83 = scmp.ne.s32.totalorder %s78, %s80
      %p84 = scmp.eq.s32.totalorder %s23, 0
      %p85 = por %p83, %p84
      %p86 = scmp.ne.s32.totalorder %s78, %s80
      %p87 = scmp.eq.s32.totalorder %s28, 1
      %p88 = por %p86, %p87
      %p89 = scmp.ne.s32.totalorder %s80, %s81
      %p90 = scmp.eq.s32.totalorder %s28, 0
      %p91 = por %p89, %p90
      %p92 = scmp.ne.s32.totalorder %s80, %s81
      %p93 = scmp.eq.s32.totalorder %s29, 1
      %p94 = por %p92, %p93
      %p96 = scmp.ne.s32.totalorder %s81, %s95
      %p97 = scmp.eq.s32.totalorder %s29, 0
      %p98 = por %p96, %p97
      %s100 = sadd.s32 %s99, 1
      %p103 = scmp.eq.s32.totalorder %s23, 1
      %p104 = scmp.ne.s32.totalorder %s99, %s101
      %p105 = scmp.eq.s32.totalorder %s23, 0
      %p106 = por %p104, %p105
      %p107 = scmp.ne.s32.totalorder %s99, %s101
      %p108 = scmp.eq.s32.totalorder %s28, 1
      %p109 = por %p107, %p108
      %p110 = scmp.ne.s32.totalorder %s101, %s102
      %p111 = scmp.eq.s32.totalorder %s28, 0
      %p112 = por %p110, %p111
      %p113 = scmp.ne.s32.totalorder %s101, %s102
      %p114 = scmp.eq.s32.totalorder %s29, 1
      %p115 = por %p113, %p114
      %p117 = scmp.ne.s32.totalorder %s102, %s116
      %p118 = scmp.eq.s32.totalorder %s29, 0
      %p119 = por %p117, %p118
      %s121 = sadd.s32 %s120, 1
      %p124 = scmp.eq.s32.totalorder %s23, 1
      %p125 = scmp.ne.s32.totalorder %s120, %s122
      %p126 = scmp.eq.s32.totalorder %s23, 0
      %p127 = por %p125, %p126
      %p128 = scmp.ne.s32.totalorder %s120, %s122
      %p129 = scmp.eq.s32.totalorder %s28, 1
      %p130 = por %p128, %p129
      %p131 = scmp.ne.s32.totalorder %s122, %s123
      %p132 = scmp.eq.s32.totalorder %s28, 0
      %p133 = por %p131, %p132
      %p134 = scmp.ne.s32.totalorder %s122, %s123
      %p135 = scmp.eq.s32.totalorder %s29, 1
      %p136 = por %p134, %p135
      %p138 = scmp.ne.s32.totalorder %s123, %s137
      %p139 = scmp.eq.s32.totalorder %s29, 0
      %p140 = por %p138, %p139
      %s142 = sadd.s32 %s141, 1
      %p145 = scmp.eq.s32.totalorder %s23, 1
      %p146 = scmp.ne.s32.totalorder %s141, %s143
      %p147 = scmp.eq.s32.totalorder %s23, 0
      %p148 = por %p146, %p147
      %p149 = scmp.ne.s32.totalorder %s141, %s143
      %p150 = scmp.eq.s32.totalorder %s28, 1
      %p151 = por %p149, %p150
      %p152 = scmp.ne.s32.totalorder %s143, %s144
      %p153 = scmp.eq.s32.totalorder %s28, 0
      %p154 = por %p152, %p153
      %p155 = scmp.ne.s32.totalorder %s143, %s144
      %p156 = scmp.eq.s32.totalorder %s29, 1
      %p157 = por %p155, %p156
      %p159 = scmp.ne.s32.totalorder %s144, %s158
      %p160 = scmp.eq.s32.totalorder %s29, 0
      %p161 = por %p159, %p160
      %s163 = sadd.s32 %s162, 1
      %p166 = scmp.eq.s32.totalorder %s23, 1
      %p167 = scmp.ne.s32.totalorder %s162, %s164
      %p168 = scmp.eq.s32.totalorder %s23, 0
      %p169 = por %p167, %p168
      %p170 = scmp.ne.s32.totalorder %s162, %s164
      %p171 = scmp.eq.s32.totalorder %s28, 1
      %p172 = por %p170, %p171
      %p173 = scmp.ne.s32.totalorder %s164, %s165
      %p174 = scmp.eq.s32.totalorder %s28, 0
      %p175 = por %p173, %p174
      %p176 = scmp.ne.s32.totalorder %s164, %s165
      %p177 = scmp.eq.s32.totalorder %s29, 1
      %p178 = por %p176, %p177
      %p180 = scmp.ne.s32.totalorder %s165, %s179
      %p181 = scmp.eq.s32.totalorder %s29, 0
      %p182 = por %p180, %p181
      %s184 = sadd.s32 %s183, 1
      %p187 = scmp.eq.s32.totalorder %s23, 1
      %p188 = scmp.ne.s32.totalorder %s183, %s185
      %p189 = scmp.eq.s32.totalorder %s23, 0
      %p190 = por %p188, %p189
      %p191 = scmp.ne.s32.totalorder %s183, %s185
      %p192 = scmp.eq.s32.totalorder %s28, 1
      %p193 = por %p191, %p192
      %p194 = scmp.ne.s32.totalorder %s185, %s186
      %p195 = scmp.eq.s32.totalorder %s28, 0
      %p196 = por %p194, %p195
      %p197 = scmp.ne.s32.totalorder %s185, %s186
      %p198 = scmp.eq.s32.totalorder %s29, 1
      %p199 = por %p197, %p198
      %p201 = scmp.ne.s32.totalorder %s186, %s200
      %p202 = scmp.eq.s32.totalorder %s29, 0
      %p203 = por %p201, %p202
      %s205 = sadd.s32 %s204, 1
      %p208 = scmp.eq.s32.totalorder %s23, 1
      %p209 = scmp.ne.s32.totalorder %s204, %s206
      %p210 = scmp.eq.s32.totalorder %s23, 0
      %p211 = por %p209, %p210
      %p212 = scmp.ne.s32.totalorder %s204, %s206
      %p213 = scmp.eq.s32.totalorder %s28, 1
      %p214 = por %p212, %p213
      %p215 = scmp.ne.s32.totalorder %s206, %s207
      %p216 = scmp.eq.s32.totalorder %s28, 0
      %p217 = por %p215, %p216
      %p218 = scmp.ne.s32.totalorder %s206, %s207
      %p219 = scmp.eq.s32.totalorder %s29, 1
      %p220 = por %p218, %p219
      %p222 = scmp.ne.s32.totalorder %s207, %s221
      %p223 = scmp.eq.s32.totalorder %s29, 0
      %p224 = por %p222, %p223
      %s225 = ssub.s32 %s23, %s30
      %p226 = scmp.eq.s32.totalorder %s225, 0
      %s228 = sadd.s32 %s227, 1
      %s229 = scalar_select %p226, %s227, %s228
      %p232 = pneg %p226
      %p233 = scmp.eq.s32.totalorder %s23, 1
      %p234 = por %p232, %p233
      %p235 = scmp.ne.s32.totalorder %s227, %s230
      %p236 = scmp.eq.s32.totalorder %s23, 0
      %p237 = por %p235, %p236
      %p238 = scmp.ne.s32.totalorder %s227, %s230
      %p239 = scmp.eq.s32.totalorder %s28, 1
      %p240 = por %p238, %p239
      %p241 = scmp.ne.s32.totalorder %s230, %s231
      %p242 = scmp.eq.s32.totalorder %s28, 0
      %p243 = por %p241, %p242
      %p244 = scmp.ne.s32.totalorder %s230, %s231
      %p245 = scmp.eq.s32.totalorder %s29, 1
      %p246 = por %p244, %p245
      %p248 = scmp.ne.s32.totalorder %s231, %s247
      %p249 = scmp.eq.s32.totalorder %s29, 0
      %p250 = por %p248, %p249
      %p251 = scmp.le.s32.totalorder 1, %s23
      %p252 = scmp.lt.s32.totalorder %s23, 3
      %p253 = pnand %p251, %p252
      %p254 = pneg %p253
      // Predicated region
      $region9: #{tpu_custom_call.1} parent=5 // pred_check
        _
      $region10: #{tpu_custom_call.1} parent=5 // pred_check_branch
        %256 = sbr.rel (%p253) target = $region12
      $region11: #{tpu_custom_call.1} parent=5 // pred_region
        %s257 = ssub.s32 %s23, 1
        // Predicated region
        $region13: #{tpu_custom_call.1} parent=11 // pred_check
          %p258 = pneg %p70
        $region14: #{tpu_custom_call.1} parent=11 // pred_check_branch
          %260 = sbr.rel (%p258) target = $region16
        $region15: #{tpu_custom_call.1} parent=11 // pred_region
          %262 = vsyncadd [#allocation7], 0
          %s263 = sshll.u32 %s1, 4
          %s264 = int_to_ptr.hbm [resolvable:$true] %s263
          %s265 = sshll.u32 [#allocation6], 4
          %s266 = int_to_ptr.vmem [resolvable:$true] %s265
          %271 = dma.hbm_to_vmem [thread:$0]  %s264, 512, %s266, [#allocation7], 128, 128, 8
        $region16: #{tpu_custom_call.1} parent=11 // pred_fallthru
          _
        // Predicated region
        $region17: #{tpu_custom_call.1} parent=11 // pred_check
          %p272 = pneg %p91
        $region18: #{tpu_custom_call.1} parent=11 // pred_check_branch
          %274 = sbr.rel (%p272) target = $region20
        $region19: #{tpu_custom_call.1} parent=11 // pred_region
          _
        $region20: #{tpu_custom_call.1} parent=11 // pred_fallthru
          _
        // Predicated region
        $region21: #{tpu_custom_call.1} parent=11 // pred_check
          %p275 = pneg %p112
        $region22: #{tpu_custom_call.1} parent=11 // pred_check_branch
          %277 = sbr.rel (%p275) target = $region24
        $region23: #{tpu_custom_call.1} parent=11 // pred_region
          %279 = vsyncadd [#allocation7], 0
          %s280 = sshll.u32 %s3, 4
          %s281 = int_to_ptr.hbm [resolvable:$true] %s280
          %s282 = sshll.u32 [#allocation8], 4
          %s283 = int_to_ptr.vmem [resolvable:$true] %s282
          %288 = dma.hbm_to_vmem [thread:$0]  %s281, 512, %s283, [#allocation7], 128, 128, 8
        $region24: #{tpu_custom_call.1} parent=11 // pred_fallthru
          _
        // Predicated region
        $region25: #{tpu_custom_call.1} parent=11 // pred_check
          %p289 = pneg %p133
        $region26: #{tpu_custom_call.1} parent=11 // pred_check_branch
          %291 = sbr.rel (%p289) target = $region28
        $region27: #{tpu_custom_call.1} parent=11 // pred_region
          _
        $region28: #{tpu_custom_call.1} parent=11 // pred_fallthru
          _
        // Predicated region
        $region29: #{tpu_custom_call.1} parent=11 // pred_check
          %p292 = pneg %p154
        $region30: #{tpu_custom_call.1} parent=11 // pred_check_branch
          %294 = sbr.rel (%p292) target = $region32
        $region31: #{tpu_custom_call.1} parent=11 // pred_region
          %296 = vsyncadd [#allocation10], 0
          %s297 = sshll.u32 %s5, 4
          %s298 = int_to_ptr.hbm [resolvable:$true] %s297
          %s299 = sshll.u32 [#allocation9], 4
          %s300 = int_to_ptr.vmem [resolvable:$true] %s299
          %305 = dma.hbm_to_vmem [thread:$0]  %s298, 512, %s300, [#allocation10], 128, 128, 8
        $region32: #{tpu_custom_call.1} parent=11 // pred_fallthru
          _
        // Predicated region
        $region33: #{tpu_custom_call.1} parent=11 // pred_check
          %p306 = pneg %p175
        $region34: #{tpu_custom_call.1} parent=11 // pred_check_branch
          %308 = sbr.rel (%p306) target = $region36
        $region35: #{tpu_custom_call.1} parent=11 // pred_region
          _
        $region36: #{tpu_custom_call.1} parent=11 // pred_fallthru
          _
        // Predicated region
        $region37: #{tpu_custom_call.1} parent=11 // pred_check
          %p309 = pneg %p196
        $region38: #{tpu_custom_call.1} parent=11 // pred_check_branch
          %311 = sbr.rel (%p309) target = $region40
        $region39: #{tpu_custom_call.1} parent=11 // pred_region
          %313 = vsyncadd [#allocation10], 0
          %s314 = sshll.u32 %s7, 4
          %s315 = int_to_ptr.hbm [resolvable:$true] %s314
          %s316 = sshll.u32 [#allocation11], 4
          %s317 = int_to_ptr.vmem [resolvable:$true] %s316
          %322 = dma.hbm_to_vmem [thread:$0]  %s315, 512, %s317, [#allocation10], 128, 128, 8
        $region40: #{tpu_custom_call.1} parent=11 // pred_fallthru
          _
        // Predicated region
        $region41: #{tpu_custom_call.1} parent=11 // pred_check
          %p323 = pneg %p217
        $region42: #{tpu_custom_call.1} parent=11 // pred_check_branch
          %325 = sbr.rel (%p323) target = $region44
        $region43: #{tpu_custom_call.1} parent=11 // pred_region
          _
        $region44: #{tpu_custom_call.1} parent=11 // pred_fallthru
          _
      $region12: #{tpu_custom_call.1} parent=5 // pred_fallthru
        _
      %p326 = scmp.lt.s32.totalorder %s23, 2
      // Predicated region
      $region45: #{tpu_custom_call.1} parent=5 // pred_check
        %p327 = pneg %p326
      $region46: #{tpu_custom_call.1} parent=5 // pred_check_branch
        %329 = sbr.rel (%p327) target = $region48
      $region47: #{tpu_custom_call.1} parent=5 // pred_region
        // Predicated region
        $region49: #{tpu_custom_call.1} parent=47 // pred_check
          %p330 = pneg %p43
        $region50: #{tpu_custom_call.1} parent=47 // pred_check_branch
          %332 = sbr.rel (%p330) target = $region52
        $region51: #{tpu_custom_call.1} parent=47 // pred_region
          %s333 = sand.u32 %s33, 1
          %s334 = scalar_lea.sflag [#allocation4], %s333
          %s335 = sand.u32 %s33, 1
          %s336 = smul.addr %s335, 8
          %s337 = scalar_lea.vmem [#allocation3], %s336
          %339 = vsyncadd %s334, 0
          %s340 = smul.addr %s23, 8
          %s341 = scalar_lea.hbm %s0, %s340
          %s343 = sshll.u32 %s341, 4
          %s344 = int_to_ptr.hbm [resolvable:$true] %s343
          %s345 = sshll.u32 %s337, 4
          %s346 = int_to_ptr.vmem [resolvable:$true] %s345
          %348 = dma.hbm_to_vmem [thread:$0]  %s344, 128, %s346, %s334
        $region52: #{tpu_custom_call.1} parent=47 // pred_fallthru
          _
      $region48: #{tpu_custom_call.1} parent=5 // pred_fallthru
        _
      %p349 = scmp.le.s32.totalorder 1, %s23
      %p350 = scmp.lt.s32.totalorder %s23, 3
      %p351 = pnand %p349, %p350
      %p352 = pneg %p351
      // Predicated region
      $region53: #{tpu_custom_call.1} parent=5 // pred_check
        _
      $region54: #{tpu_custom_call.1} parent=5 // pred_check_branch
        %354 = sbr.rel (%p351) target = $region56
      $region55: #{tpu_custom_call.1} parent=5 // pred_region
        %s355 = ssub.s32 %s23, 1
        %s356 = sand.u32 %s36, 1
        %s357 = scalar_lea.sflag [#allocation4], %s356
        %s358 = sand.u32 %s36, 1
        %s359 = smul.addr %s358, 8
        %s360 = scalar_lea.vmem [#allocation3], %s359
        // Predicated region
        $region57: #{tpu_custom_call.1} parent=55 // pred_check
          %p361 = pneg %p49
        $region58: #{tpu_custom_call.1} parent=55 // pred_check_branch
          %363 = sbr.rel (%p361) target = $region60
        $region59: #{tpu_custom_call.1} parent=55 // pred_region
          %365 = dma.done %s357, 128
        $region60: #{tpu_custom_call.1} parent=55 // pred_fallthru
          _
        // Predicated region
        $region61: #{tpu_custom_call.1} parent=55 // pred_check
          %p366 = pneg %p70
        $region62: #{tpu_custom_call.1} parent=55 // pred_check_branch
          %368 = sbr.rel (%p366) target = $region64
        $region63: #{tpu_custom_call.1} parent=55 // pred_region
          %370 = dma.done [#allocation7], 512
        $region64: #{tpu_custom_call.1} parent=55 // pred_fallthru
          _
        // Predicated region
        $region65: #{tpu_custom_call.1} parent=55 // pred_check
          %p371 = pneg %p112
        $region66: #{tpu_custom_call.1} parent=55 // pred_check_branch
          %373 = sbr.rel (%p371) target = $region68
        $region67: #{tpu_custom_call.1} parent=55 // pred_region
          %375 = dma.done [#allocation7], 512
        $region68: #{tpu_custom_call.1} parent=55 // pred_fallthru
          _
        // Predicated region
        $region69: #{tpu_custom_call.1} parent=55 // pred_check
          %p376 = pneg %p154
        $region70: #{tpu_custom_call.1} parent=55 // pred_check_branch
          %378 = sbr.rel (%p376) target = $region72
        $region71: #{tpu_custom_call.1} parent=55 // pred_region
          %380 = dma.done [#allocation10], 512
        $region72: #{tpu_custom_call.1} parent=55 // pred_fallthru
          _
        // Predicated region
        $region73: #{tpu_custom_call.1} parent=55 // pred_check
          %p381 = pneg %p196
        $region74: #{tpu_custom_call.1} parent=55 // pred_check_branch
          %383 = sbr.rel (%p381) target = $region76
        $region75: #{tpu_custom_call.1} parent=55 // pred_region
          %385 = dma.done [#allocation10], 512
        $region76: #{tpu_custom_call.1} parent=55 // pred_fallthru
          _
        %s386 = sand.u32 %s36, 1
        %s387 = scalar_lea.sflag [#allocation4], %s386
        %s388 = sand.u32 %s36, 1
        %s389 = smul.addr %s388, 8
        %s390 = scalar_lea.vmem [#allocation3], %s389
        %p391 = pneg %p49
        %p392 = pneg %p46
        %p393 = pneg %p70
        %p394 = pneg %p67
        %p395 = pneg %p91
        %p396 = pneg %p88
        %p397 = pneg %p112
        %p398 = pneg %p109
        %p399 = pneg %p133
        %p400 = pneg %p130
        %p401 = pneg %p154
        %p402 = pneg %p151
        %p403 = pneg %p175
        %p404 = pneg %p172
        %p405 = pneg %p196
        %p406 = pneg %p193
        %p407 = pneg %p217
        %p408 = pneg %p214
        %p409 = pneg %p243
        %p410 = pneg %p240
        %s411 = sand.u32 %s230, 1
        %s412 = scalar_lea.sflag [#allocation5], %s411
        %s413 = sand.u32 %s230, 1
        %s414 = smul.addr %s413, 8
        %s415 = scalar_lea.vmem [#allocation12], %s414
        %v416 = vld [vmem:[%s360] sm:$0xff]
        %v417 = vld [vmem:[#allocation6] sm:$0xff]
        %v418 = vld [vmem:[#allocation6 + $0x8] sm:$0xff]
        %v419 = vld [vmem:[#allocation6 + $0x10] sm:$0xff]
        %v420 = vld [vmem:[#allocation6 + $0x18] sm:$0xff]
        %v421 = vld [vmem:[%s2] sm:$0x1]
        %v423 = vperm.slane %v421, 0
        %vm425 = vcmask 261120
        %v427 = vsel %vm425, %v416, 0
        %429 = vmatpush.msra.mxu0 0.0
        %430 = vmatpush.msra.mxu0 0.0
        %431 = vmatpush.msra.mxu0 0.0
        %432 = vmatpush.msra.mxu0 0.0
        %433 = vmatpush.msra.mxu0 0.0
        %434 = vmatpush.msra.mxu0 0.0
        %435 = vmatpush.msra.mxu0 0.0
        %436 = vmatpush.msra.mxu0 0.0
        %437 = vmatpush.msra.mxu0 0.0
        %438 = vmatpush.msra.mxu0 0.0
        %439 = vmatpush.msra.mxu0 0.0
        %440 = vmatpush.msra.mxu0 0.0
        %441 = vmatpush.msra.mxu0 %v420
        %442 = vmatpush.msra.mxu0 %v419
        %443 = vmatpush.msra.mxu0 %v418
        %444 = vmatpush.msra.mxu0 %v417
        %445 = vmatmul.f32.gmra.mxu0 %v427
        %v446 = vpop.f32.mrf.mxu0
        %v447 = vadd.f32 %v423, %v446
        %448 = vdwg.mxu0
        %v449 = vmul.f32 %v447, 0.17677669
        %v450 = vld [vmem:[#allocation8] sm:$0xff]
        %v451 = vld [vmem:[#allocation8 + $0x8] sm:$0xff]
        %v452 = vld [vmem:[#allocation8 + $0x10] sm:$0xff]
        %v453 = vld [vmem:[#allocation8 + $0x18] sm:$0xff]
        %v454 = vld [vmem:[%s4] sm:$0x1]
        %v456 = vperm.slane %v454, 0
        %458 = vmatpush.msra.mxu0 0.0
        %459 = vmatpush.msra.mxu0 0.0
        %460 = vmatpush.msra.mxu0 0.0
        %461 = vmatpush.msra.mxu0 0.0
        %462 = vmatpush.msra.mxu0 0.0
        %463 = vmatpush.msra.mxu0 0.0
        %464 = vmatpush.msra.mxu0 0.0
        %465 = vmatpush.msra.mxu0 0.0
        %466 = vmatpush.msra.mxu0 0.0
        %467 = vmatpush.msra.mxu0 0.0
        %468 = vmatpush.msra.mxu0 0.0
        %469 = vmatpush.msra.mxu0 0.0
        %470 = vmatpush.msra.mxu0 %v453
        %471 = vmatpush.msra.mxu0 %v452
        %472 = vmatpush.msra.mxu0 %v451
        %473 = vmatpush.msra.mxu0 %v450
        %474 = vmatmul.f32.gmra.mxu0 %v427
        %v475 = vpop.f32.mrf.mxu0
        %v476 = vadd.f32 %v456, %v475
        %477 = vdwg.mxu0
        %v478 = vld [vmem:[#allocation9] sm:$0xff]
        %v479 = vld [vmem:[#allocation9 + $0x8] sm:$0xff]
        %v480 = vld [vmem:[#allocation9 + $0x10] sm:$0xff]
        %v481 = vld [vmem:[#allocation9 + $0x18] sm:$0xff]
        %v482 = vld [vmem:[%s6] sm:$0x1]
        %v484 = vperm.slane %v482, 0
        %486 = vmatpush.msra.mxu0 0.0
        %487 = vmatpush.msra.mxu0 0.0
        %488 = vmatpush.msra.mxu0 0.0
        %489 = vmatpush.msra.mxu0 0.0
        %490 = vmatpush.msra.mxu0 0.0
        %491 = vmatpush.msra.mxu0 0.0
        %492 = vmatpush.msra.mxu0 0.0
        %493 = vmatpush.msra.mxu0 0.0
        %494 = vmatpush.msra.mxu0 0.0
        %495 = vmatpush.msra.mxu0 0.0
        %496 = vmatpush.msra.mxu0 0.0
        %497 = vmatpush.msra.mxu0 0.0
        %498 = vmatpush.msra.mxu0 %v481
        %499 = vmatpush.msra.mxu0 %v480
        %500 = vmatpush.msra.mxu0 %v479
        %501 = vmatpush.msra.mxu0 %v478
        %502 = vmatmul.f32.gmra.mxu0 %v427
        %v503 = vpop.f32.mrf.mxu0
        %v504 = vadd.f32 %v484, %v503
        %505 = vdwg.mxu0
        %vm506 = vcmask 64512
        %v508 = vsel %vm506, %v449, 0
        %v511 = vsel %vm506, %v476, 0
        %513 = vmatpush.xpose.msra.mxu0 0.0
        %514 = vmatpush.xpose.msra.mxu0 0.0
        %515 = vmatpush.xpose.msra.mxu0 0.0
        %516 = vmatpush.xpose.msra.mxu0 0.0
        %517 = vmatpush.xpose.msra.mxu0 0.0
        %518 = vmatpush.xpose.msra.mxu0 0.0
        %519 = vmatpush.xpose.msra.mxu0 0.0
        %520 = vmatpush.xpose.msra.mxu0 0.0
        %521 = vmatpush.xpose.msra.mxu0 0.0
        %522 = vmatpush.xpose.msra.mxu0 0.0
        %523 = vmatpush.xpose.msra.mxu0 0.0
        %524 = vmatpush.xpose.msra.mxu0 0.0
        %525 = vmatpush.xpose.msra.mxu0 0.0
        %526 = vmatpush.xpose.msra.mxu0 0.0
        %527 = vmatpush.xpose.msra.mxu0 0.0
        %528 = vmatpush.xpose.msra.mxu0 %v511
        %529 = vmatmul.f32.gmra.mxu0 %v508
        %v530 = vpop.f32.mrf.mxu0
        %v531 = vadd.f32 0.0, %v530
        %532 = vdwg.mxu0
        %v533 = vsel %vm506, %v531, -inf
        %534 = vmax.xlane.f32.xlu0 %v533
        %v535 = vpop.xlane.xlu0 %534
        %v536 = vsub.f32 %v531, %v535
        %v537 = vmul.f32 %v536, 1.442695
        %v538 = vpow.pop %v537
        %v539 = vsel %vm506, %v538, 0.0
        %540 = vadd.xlane.f32.xlu0 %v539
        %v541 = vpop.xlane.xlu0 %540
        %v542 = vrcp.pop %v541
        %v543 = vmul.f32 %v541, %v542
        %v544 = vsub.f32 1.0, %v543
        %v545 = vmul.f32 %v542, %v544
        %v546 = vadd.f32 %v542, %v545
        %vm547 = vweird.f32 %v541
        %vm548 = vweird.f32 %v542
        %vm549 = vmor %vm547, %vm548
        %v550 = vsel %vm549, %v542, %v546
        %v551 = vand.u32 2147483647, %v541
        %vm552 = vcmp.eq.f32.partialorder %v551, 8.507059e+37
        %v553 = vand.u32 %v541, 2147483648
        %v554 = vor.u32 1.1754944e-38, %v553
        %v555 = vsel %vm552, %v554, %v550
        %v556 = vmul.f32 %v538, %v555
        %v558 = vsel %vm506, %v556, 0
        %560 = vmatpush.msra.mxu0 0.0
        %561 = vmatpush.msra.mxu0 0.0
        %562 = vmatpush.msra.mxu0 0.0
        %563 = vmatpush.msra.mxu0 0.0
        %564 = vmatpush.msra.mxu0 0.0
        %565 = vmatpush.msra.mxu0 0.0
        %566 = vmatpush.msra.mxu0 0.0
        %567 = vmatpush.msra.mxu0 0.0
        %568 = vmatpush.msra.mxu0 0.0
        %569 = vmatpush.msra.mxu0 0.0
        %570 = vmatpush.msra.mxu0 0.0
        %571 = vmatpush.msra.mxu0 0.0
        %572 = vmatpush.msra.mxu0 0.0
        %573 = vmatpush.msra.mxu0 0.0
        %574 = vmatpush.msra.mxu0 0.0
        %575 = vmatpush.msra.mxu0 %v504
        %576 = vmatmul.f32.gmra.mxu0 %v558
        %v577 = vpop.f32.mrf.mxu0
        %v578 = vadd.f32 0.0, %v577
        %579 = vdwg.mxu0
        %580 = vst.msk [vmem:[#allocation2] sm:$0xff] %vm506, %v578
        %581 = vrot.lane.b32.xlu0 %v449, 120
        %v582 = vpop.permute.xlu0 %581
        %583 = vrot.lane.b32.xlu0 %v476, 120
        %v584 = vpop.permute.xlu0 %583
        %v585 = vsel %vm506, %v582, 0
        %v587 = vsel %vm506, %v584, 0
        %589 = vmatpush.xpose.msra.mxu0 0.0
        %590 = vmatpush.xpose.msra.mxu0 0.0
        %591 = vmatpush.xpose.msra.mxu0 0.0
        %592 = vmatpush.xpose.msra.mxu0 0.0
        %593 = vmatpush.xpose.msra.mxu0 0.0
        %594 = vmatpush.xpose.msra.mxu0 0.0
        %595 = vmatpush.xpose.msra.mxu0 0.0
        %596 = vmatpush.xpose.msra.mxu0 0.0
        %597 = vmatpush.xpose.msra.mxu0 0.0
        %598 = vmatpush.xpose.msra.mxu0 0.0
        %599 = vmatpush.xpose.msra.mxu0 0.0
        %600 = vmatpush.xpose.msra.mxu0 0.0
        %601 = vmatpush.xpose.msra.mxu0 0.0
        %602 = vmatpush.xpose.msra.mxu0 0.0
        %603 = vmatpush.xpose.msra.mxu0 0.0
        %604 = vmatpush.xpose.msra.mxu0 %v587
        %605 = vmatmul.f32.gmra.mxu0 %v585
        %v606 = vpop.f32.mrf.mxu0
        %v607 = vadd.f32 0.0, %v606
        %608 = vdwg.mxu0
        %v609 = vsel %vm506, %v607, -inf
        %610 = vmax.xlane.f32.xlu0 %v609
        %v611 = vpop.xlane.xlu0 %610
        %v612 = vsub.f32 %v607, %v611
        %v613 = vmul.f32 %v612, 1.442695
        %v614 = vpow.pop %v613
        %v615 = vsel %vm506, %v614, 0.0
        %616 = vadd.xlane.f32.xlu0 %v615
        %v617 = vpop.xlane.xlu0 %616
        %v618 = vrcp.pop %v617
        %v619 = vmul.f32 %v617, %v618
        %v620 = vsub.f32 1.0, %v619
        %v621 = vmul.f32 %v618, %v620
        %v622 = vadd.f32 %v618, %v621
        %vm623 = vweird.f32 %v617
        %vm624 = vweird.f32 %v618
        %vm625 = vmor %vm623, %vm624
        %v626 = vsel %vm625, %v618, %v622
        %v627 = vand.u32 2147483647, %v617
        %vm628 = vcmp.eq.f32.partialorder %v627, 8.507059e+37
        %v629 = vand.u32 %v617, 2147483648
        %v630 = vor.u32 1.1754944e-38, %v629
        %v631 = vsel %vm628, %v630, %v626
        %v632 = vmul.f32 %v614, %v631
        %634 = vrot.lane.b32.xlu0 %v504, 120
        %v635 = vpop.permute.xlu0 %634
        %v638 = vsel %vm506, %v632, 0
        %640 = vmatpush.msra.mxu0 0.0
        %641 = vmatpush.msra.mxu0 0.0
        %642 = vmatpush.msra.mxu0 0.0
        %643 = vmatpush.msra.mxu0 0.0
        %644 = vmatpush.msra.mxu0 0.0
        %645 = vmatpush.msra.mxu0 0.0
        %646 = vmatpush.msra.mxu0 0.0
        %647 = vmatpush.msra.mxu0 0.0
        %648 = vmatpush.msra.mxu0 0.0
        %649 = vmatpush.msra.mxu0 0.0
        %650 = vmatpush.msra.mxu0 0.0
        %651 = vmatpush.msra.mxu0 0.0
        %652 = vmatpush.msra.mxu0 0.0
        %653 = vmatpush.msra.mxu0 0.0
        %654 = vmatpush.msra.mxu0 0.0
        %655 = vmatpush.msra.mxu0 %v635
        %656 = vmatmul.f32.gmra.mxu0 %v638
        %v657 = vpop.f32.mrf.mxu0
        %v658 = vadd.f32 0.0, %v657
        %659 = vdwg.mxu0
        %661 = vrot.lane.b32.xlu0 %v658, 8
        %v662 = vpop.permute.xlu0 %661
        %vm664 = vcmask 130112
        %665 = vst.msk [vmem:[#allocation2] sm:$0xff] %vm664, %v662
        %666 = vrot.lane.b32.xlu0 %v449, 112
        %v667 = vpop.permute.xlu0 %666
        %668 = vrot.lane.b32.xlu0 %v476, 112
        %v669 = vpop.permute.xlu0 %668
        %v670 = vsel %vm506, %v667, 0
        %v672 = vsel %vm506, %v669, 0
        %674 = vmatpush.xpose.msra.mxu0 0.0
        %675 = vmatpush.xpose.msra.mxu0 0.0
        %676 = vmatpush.xpose.msra.mxu0 0.0
        %677 = vmatpush.xpose.msra.mxu0 0.0
        %678 = vmatpush.xpose.msra.mxu0 0.0
        %679 = vmatpush.xpose.msra.mxu0 0.0
        %680 = vmatpush.xpose.msra.mxu0 0.0
        %681 = vmatpush.xpose.msra.mxu0 0.0
        %682 = vmatpush.xpose.msra.mxu0 0.0
        %683 = vmatpush.xpose.msra.mxu0 0.0
        %684 = vmatpush.xpose.msra.mxu0 0.0
        %685 = vmatpush.xpose.msra.mxu0 0.0
        %686 = vmatpush.xpose.msra.mxu0 0.0
        %687 = vmatpush.xpose.msra.mxu0 0.0
        %688 = vmatpush.xpose.msra.mxu0 0.0
        %689 = vmatpush.xpose.msra.mxu0 %v672
        %690 = vmatmul.f32.gmra.mxu0 %v670
        %v691 = vpop.f32.mrf.mxu0
        %v692 = vadd.f32 0.0, %v691
        %693 = vdwg.mxu0
        %v694 = vsel %vm506, %v692, -inf
        %695 = vmax.xlane.f32.xlu0 %v694
        %v696 = vpop.xlane.xlu0 %695
        %v697 = vsub.f32 %v692, %v696
        %v698 = vmul.f32 %v697, 1.442695
        %v699 = vpow.pop %v698
        %v700 = vsel %vm506, %v699, 0.0
        %701 = vadd.xlane.f32.xlu0 %v700
        %v702 = vpop.xlane.xlu0 %701
        %v703 = vrcp.pop %v702
        %v704 = vmul.f32 %v702, %v703
        %v705 = vsub.f32 1.0, %v704
        %v706 = vmul.f32 %v703, %v705
        %v707 = vadd.f32 %v703, %v706
        %vm708 = vweird.f32 %v702
        %vm709 = vweird.f32 %v703
        %vm710 = vmor %vm708, %vm709
        %v711 = vsel %vm710, %v703, %v707
        %v712 = vand.u32 2147483647, %v702
        %vm713 = vcmp.eq.f32.partialorder %v712, 8.507059e+37
        %v714 = vand.u32 %v702, 2147483648
        %v715 = vor.u32 1.1754944e-38, %v714
        %v716 = vsel %vm713, %v715, %v711
        %v717 = vmul.f32 %v699, %v716
        %718 = vrot.lane.b32.xlu0 %v504, 112
        %v719 = vpop.permute.xlu0 %718
        %v722 = vsel %vm506, %v717, 0
        %724 = vmatpush.msra.mxu0 0.0
        %725 = vmatpush.msra.mxu0 0.0
        %726 = vmatpush.msra.mxu0 0.0
        %727 = vmatpush.msra.mxu0 0.0
        %728 = vmatpush.msra.mxu0 0.0
        %729 = vmatpush.msra.mxu0 0.0
        %730 = vmatpush.msra.mxu0 0.0
        %731 = vmatpush.msra.mxu0 0.0
        %732 = vmatpush.msra.mxu0 0.0
        %733 = vmatpush.msra.mxu0 0.0
        %734 = vmatpush.msra.mxu0 0.0
        %735 = vmatpush.msra.mxu0 0.0
        %736 = vmatpush.msra.mxu0 0.0
        %737 = vmatpush.msra.mxu0 0.0
        %738 = vmatpush.msra.mxu0 0.0
        %739 = vmatpush.msra.mxu0 %v719
        %740 = vmatmul.f32.gmra.mxu0 %v722
        %v741 = vpop.f32.mrf.mxu0
        %v742 = vadd.f32 0.0, %v741
        %743 = vdwg.mxu0
        %745 = vrot.lane.b32.xlu0 %v742, 16
        %v746 = vpop.permute.xlu0 %745
        %vm748 = vcmask 195712
        %749 = vst.msk [vmem:[#allocation2] sm:$0xff] %vm748, %v746
        %750 = vrot.lane.b32.xlu0 %v449, 104
        %v751 = vpop.permute.xlu0 %750
        %752 = vrot.lane.b32.xlu0 %v476, 104
        %v753 = vpop.permute.xlu0 %752
        %v754 = vsel %vm506, %v751, 0
        %v756 = vsel %vm506, %v753, 0
        %758 = vmatpush.xpose.msra.mxu0 0.0
        %759 = vmatpush.xpose.msra.mxu0 0.0
        %760 = vmatpush.xpose.msra.mxu0 0.0
        %761 = vmatpush.xpose.msra.mxu0 0.0
        %762 = vmatpush.xpose.msra.mxu0 0.0
        %763 = vmatpush.xpose.msra.mxu0 0.0
        %764 = vmatpush.xpose.msra.mxu0 0.0
        %765 = vmatpush.xpose.msra.mxu0 0.0
        %766 = vmatpush.xpose.msra.mxu0 0.0
        %767 = vmatpush.xpose.msra.mxu0 0.0
        %768 = vmatpush.xpose.msra.mxu0 0.0
        %769 = vmatpush.xpose.msra.mxu0 0.0
        %770 = vmatpush.xpose.msra.mxu0 0.0
        %771 = vmatpush.xpose.msra.mxu0 0.0
        %772 = vmatpush.xpose.msra.mxu0 0.0
        %773 = vmatpush.xpose.msra.mxu0 %v756
        %774 = vmatmul.f32.gmra.mxu0 %v754
        %v775 = vpop.f32.mrf.mxu0
        %v776 = vadd.f32 0.0, %v775
        %777 = vdwg.mxu0
        %v778 = vsel %vm506, %v776, -inf
        %779 = vmax.xlane.f32.xlu0 %v778
        %v780 = vpop.xlane.xlu0 %779
        %v781 = vsub.f32 %v776, %v780
        %v782 = vmul.f32 %v781, 1.442695
        %v783 = vpow.pop %v782
        %v784 = vsel %vm506, %v783, 0.0
        %785 = vadd.xlane.f32.xlu0 %v784
        %v786 = vpop.xlane.xlu0 %785
        %v787 = vrcp.pop %v786
        %v788 = vmul.f32 %v786, %v787
        %v789 = vsub.f32 1.0, %v788
        %v790 = vmul.f32 %v787, %v789
        %v791 = vadd.f32 %v787, %v790
        %vm792 = vweird.f32 %v786
        %vm793 = vweird.f32 %v787
        %vm794 = vmor %vm792, %vm793
        %v795 = vsel %vm794, %v787, %v791
        %v796 = vand.u32 2147483647, %v786
        %vm797 = vcmp.eq.f32.partialorder %v796, 8.507059e+37
        %v798 = vand.u32 %v786, 2147483648
        %v799 = vor.u32 1.1754944e-38, %v798
        %v800 = vsel %vm797, %v799, %v795
        %v801 = vmul.f32 %v783, %v800
        %802 = vrot.lane.b32.xlu0 %v504, 104
        %v803 = vpop.permute.xlu0 %802
        %v806 = vsel %vm506, %v801, 0
        %808 = vmatpush.msra.mxu0 0.0
        %809 = vmatpush.msra.mxu0 0.0
        %810 = vmatpush.msra.mxu0 0.0
        %811 = vmatpush.msra.mxu0 0.0
        %812 = vmatpush.msra.mxu0 0.0
        %813 = vmatpush.msra.mxu0 0.0
        %814 = vmatpush.msra.mxu0 0.0
        %815 = vmatpush.msra.mxu0 0.0
        %816 = vmatpush.msra.mxu0 0.0
        %817 = vmatpush.msra.mxu0 0.0
        %818 = vmatpush.msra.mxu0 0.0
        %819 = vmatpush.msra.mxu0 0.0
        %820 = vmatpush.msra.mxu0 0.0
        %821 = vmatpush.msra.mxu0 0.0
        %822 = vmatpush.msra.mxu0 0.0
        %823 = vmatpush.msra.mxu0 %v803
        %824 = vmatmul.f32.gmra.mxu0 %v806
        %v825 = vpop.f32.mrf.mxu0
        %v826 = vadd.f32 0.0, %v825
        %827 = vdwg.mxu0
        %829 = vrot.lane.b32.xlu0 %v826, 24
        %v830 = vpop.permute.xlu0 %829
        %vm832 = vcmask 261312
        %833 = vst.msk [vmem:[#allocation2] sm:$0xff] %vm832, %v830
        %v834 = vld [vmem:[#allocation2] sm:$0xff]
        %v835 = vld [vmem:[#allocation11] sm:$0xff]
        %v836 = vld [vmem:[#allocation11 + $0x8] sm:$0xff]
        %v837 = vld [vmem:[#allocation11 + $0x10] sm:$0xff]
        %v838 = vld [vmem:[#allocation11 + $0x18] sm:$0xff]
        %v839 = vld [vmem:[%s8] sm:$0x1]
        %v841 = vperm.slane %v839, 0
        %v844 = vsel %vm425, %v834, 0
        %846 = vmatpush.msra.mxu0 0.0
        %847 = vmatpush.msra.mxu0 0.0
        %848 = vmatpush.msra.mxu0 0.0
        %849 = vmatpush.msra.mxu0 0.0
        %850 = vmatpush.msra.mxu0 0.0
        %851 = vmatpush.msra.mxu0 0.0
        %852 = vmatpush.msra.mxu0 0.0
        %853 = vmatpush.msra.mxu0 0.0
        %854 = vmatpush.msra.mxu0 0.0
        %855 = vmatpush.msra.mxu0 0.0
        %856 = vmatpush.msra.mxu0 0.0
        %857 = vmatpush.msra.mxu0 0.0
        %858 = vmatpush.msra.mxu0 %v838
        %859 = vmatpush.msra.mxu0 %v837
        %860 = vmatpush.msra.mxu0 %v836
        %861 = vmatpush.msra.mxu0 %v835
        %862 = vmatmul.f32.gmra.mxu0 %v844
        %v863 = vpop.f32.mrf.mxu0
        %v864 = vadd.f32 %v841, %v863
        %865 = vdwg.mxu0
        %866 = vst.msk [vmem:[%s415] sm:$0xff] %vm425, %v864
        %s867 = sand.u32 %s230, 1
        %s868 = scalar_lea.sflag [#allocation5], %s867
        %s869 = sand.u32 %s230, 1
        %s870 = smul.addr %s869, 8
        %s871 = scalar_lea.vmem [#allocation12], %s870
        // Predicated region
        $region77: #{tpu_custom_call.1} parent=55 // pred_check
          %p872 = pneg %p240
        $region78: #{tpu_custom_call.1} parent=55 // pred_check_branch
          %874 = sbr.rel (%p872) target = $region80
        $region79: #{tpu_custom_call.1} parent=55 // pred_region
          %876 = vsyncadd %s868, 0
          %s877 = smul.addr %s28, 8
          %s878 = scalar_lea.hbm %s9, %s877
          %s880 = sshll.u32 %s871, 4
          %s881 = int_to_ptr.vmem [resolvable:$true] %s880
          %s882 = sshll.u32 %s878, 4
          %s883 = int_to_ptr.hbm [resolvable:$true] %s882
          %885 = dma.vmem_to_hbm [thread:$0]  %s881, 128, %s883, %s868
        $region80: #{tpu_custom_call.1} parent=55 // pred_fallthru
          _
      $region56: #{tpu_custom_call.1} parent=5 // pred_fallthru
        _
      %p886 = scmp.le.s32.totalorder 2, %s23
      // Predicated region
      $region81: #{tpu_custom_call.1} parent=5 // pred_check
        %p887 = pneg %p886
      $region82: #{tpu_custom_call.1} parent=5 // pred_check_branch
        %889 = sbr.rel (%p887) target = $region84
      $region83: #{tpu_custom_call.1} parent=5 // pred_region
        %s890 = ssub.s32 %s23, 2
        // Predicated region
        $region85: #{tpu_custom_call.1} parent=83 // pred_check
          %p891 = pneg %p246
        $region86: #{tpu_custom_call.1} parent=83 // pred_check_branch
          %893 = sbr.rel (%p891) target = $region88
        $region87: #{tpu_custom_call.1} parent=83 // pred_region
          %s894 = sand.u32 %s231, 1
          %s895 = scalar_lea.sflag [#allocation5], %s894
          %s896 = sand.u32 %s231, 1
          %s897 = smul.addr %s896, 8
          %s898 = scalar_lea.vmem [#allocation12], %s897
          %900 = dma.done %s895, 128
        $region88: #{tpu_custom_call.1} parent=83 // pred_fallthru
          _
      $region84: #{tpu_custom_call.1} parent=5 // pred_fallthru
        _
    $region6: #{tpu_custom_call.1} parent=1 // loop_footer
      %s27 = sadd.s32 1, %s23
    $region7: #{tpu_custom_call.1} parent=1 // loop_footer_branch
      %22 = sbr.rel target = $region3
    $region8: #{tpu_custom_call.1} parent=1 // loop_exit
      _
    %901 = vsyncpa [#allocation4], 1
    %s902 = scalar_lea.sflag [#allocation4], 1
    %903 = vsyncpa %s902, 1
    %904 = vsyncpa [#allocation7], 1
    %905 = vsyncpa [#allocation10], 1
    %906 = vsyncpa [#allocation5], 1
    %s907 = scalar_lea.sflag [#allocation5], 1
    %908 = vsyncpa %s907, 1

</llo_original>
